<compile_context>
chip_gen: v6e
topology: v6e:2x2x1
jax: 0.10.0
libtpu: 0.0.40
codegen_flags: <defaults>
</compile_context>

<pallas_src>
import jax
import jax.numpy as jnp
from jax.experimental import pallas as pl
from jax.experimental.pallas import tpu as pltpu

_LANE = 128
_TILE_BYTE_BUDGET = 4 * 1024 * 1024  # ~4 MiB per x tile (1-4 MiB sweet spot)


def _select_hw_tile(C, HW, itemsize, max_tile_bytes):
    """Byte-budgeted, lane-dense HW tile; divisor-aligned when possible."""
    budget = max(max_tile_bytes, C * itemsize * _LANE)  # >= one 128-lane slice
    max_lanes = max(_LANE, (budget // (C * itemsize)) // _LANE * _LANE)
    if HW <= max_lanes:
        return HW  # whole spatial extent in one tile (full-extent block, no mask)
    if HW % _LANE == 0:
        units = HW // _LANE
        for d in range(min(units, max_lanes // _LANE), 0, -1):
            if units % d == 0:
                return d * _LANE  # largest 128-multiple divisor in budget -> no mask
    # Ragged fallback: largest 128-multiple within budget (last tile masked).
    return min(max_lanes, (HW // _LANE) * _LANE)


def _make_kernel(C, HW, HW_TILE, PART, num_hw, inv_hw, need_mask):
    T = HW_TILE // PART  # 128-lane sub-slices per full tile (static)
    if need_mask:
        rem = HW - (num_hw - 1) * HW_TILE  # valid lanes in the last tile (static)
        n_full_last = rem // PART
        tail_last = rem % PART
    else:
        n_full_last, tail_last = T, 0

    def kernel(x_ref, w1t_ref, w2t_ref, out_ref, sum_acc, max_acc):
        hw = pl.program_id(1)
        last = pl.num_programs(1) - 1

        @pl.when(hw == 0)
        def _init():
            sum_acc[...] = jnp.zeros_like(sum_acc)
            max_acc[...] = jnp.full_like(max_acc, -jnp.inf)

        def fold(n_full, tail):
            # Stream one 128-lane slice per load (Ref views are zero-cost);
            # lane-resident partials -> the single XLU reduce is in finalize.
            if n_full > 0:
                s = x_ref[:, :, 0:PART].astype(jnp.float32)
                psum, pmax = s, s
            else:
                psum = jnp.zeros((1, C, PART), jnp.float32)
                pmax = jnp.full((1, C, PART), -jnp.inf, jnp.float32)
            for t in range(1, n_full):
                s = x_ref[:, :, t * PART:(t + 1) * PART].astype(jnp.float32)
                psum = psum + s
                pmax = jnp.maximum(pmax, s)
            if tail:
                # Only the single straddling 128-lane slice needs a mask.
                t = n_full
                s = x_ref[:, :, t * PART:(t + 1) * PART].astype(jnp.float32)
                lane = jax.lax.broadcasted_iota(jnp.int32, (1, C, PART), 2)
                valid = lane < tail
                psum = psum + jnp.where(valid, s, 0.0)
                pmax = jnp.maximum(pmax, jnp.where(valid, s, -jnp.inf))
            sum_acc[...] = sum_acc[...] + psum
            max_acc[...] = jnp.maximum(max_acc[...], pmax)

        if need_mask:
            # Hot path (interior tiles) stays mask-free; masked fold only on
            # the last HW tile.
            @pl.when(hw < last)
            def _fold_interior():
                fold(T, 0)

            @pl.when(hw == last)
            def _fold_last():
                fold(n_full_last, tail_last)
        else:
            fold(T, 0)

        @pl.when(hw == last)
        def _finalize():
            avg = jnp.sum(sum_acc[...], axis=-1) * inv_hw      # (1, C)
            mx = jnp.max(max_acc[...], axis=-1)                # (1, C)
            stacked = jnp.concatenate([avg, mx], axis=0)       # (2, C)
            h = jnp.dot(stacked, w1t_ref[...],
                        preferred_element_type=jnp.float32)
            h = jnp.maximum(h, 0.0)                            # ReLU
            o = jnp.dot(h, w2t_ref[...],
                        preferred_element_type=jnp.float32)    # (2, C)
            att = jax.nn.sigmoid(o[0:1, :] + o[1:2, :])        # (1, C)
            out_ref[...] = att.reshape(1, 1, C)

    return kernel


def channel_attention(x, w1, w2, *, max_tile_bytes=_TILE_BYTE_BUDGET):
    """x: (N, C, H, W) float (f32 or bf16); w1: (C//ratio, C) fc1 weight;
    w2: (C, C//ratio) fc2 weight (1x1 convs, no bias).
    Returns (N, C, 1, 1) f32, matching the PyTorch module."""
    N, C, H, W = x.shape
    Cr = w1.shape[0]
    assert w1.shape == (Cr, C) and w2.shape == (C, Cr)
    HW = H * W
    x_flat = x.reshape(N, C, HW)
    itemsize = jnp.dtype(x.dtype).itemsize

    # Pre-transpose weights once so the kernel does v @ w with no in-kernel .T.
    w1t = jnp.transpose(w1).astype(jnp.float32)  # (C, Cr)
    w2t = jnp.transpose(w2).astype(jnp.float32)  # (Cr, C)

    hw_tile = _select_hw_tile(C, HW, itemsize, max_tile_bytes)
    part = min(_LANE, hw_tile)
    num_hw = pl.cdiv(HW, hw_tile)
    need_mask = (HW % hw_tile) != 0

    kernel = _make_kernel(C, HW, hw_tile, part, num_hw, 1.0 / float(HW),
                          need_mask)

    tile_bytes = C * hw_tile * itemsize
    # 3-deep buffering on x only when there are enough tiles and they're big
    # enough for it to matter (v5e/v6e have ample VMEM; still tiny on v7x).
    buf_count = 3 if (num_hw >= 3 and tile_bytes >= (1 << 20)) else 2

    x_idx = lambda n, k: (n, 0, k)
    x_spec = pl.BlockSpec((1, C, hw_tile), x_idx)
    if buf_count > 2:
        buffered = getattr(pl, "Buffered", None)
        if buffered is not None:
            try:
                x_spec = pl.BlockSpec((1, C, hw_tile), x_idx,
                                      pipeline_mode=buffered(buf_count))
            except TypeError:
                buf_count = 2
                x_spec = pl.BlockSpec((1, C, hw_tile), x_idx)
        else:
            buf_count = 2

    # VMEM budget: buffers for x + weights + scratch + headroom; capped at
    # 48 MiB (leave headroom on v7x's 64 MiB), floored at 16 MiB (v5e default).
    weights_bytes = 2 * 2 * C * Cr * 4
    scratch_bytes = 2 * C * part * 4
    need = buf_count * tile_bytes + weights_bytes + scratch_bytes + (4 << 20)
    vmem_limit = int(min(48 << 20, max(16 << 20, need)))

    cost = pl.CostEstimate(
        flops=2 * N * C * HW + 8 * N * C * Cr,
        transcendentals=N * C,
        bytes_accessed=N * C * HW * itemsize + 2 * C * Cr * 4 + N * C * 4,
    )

    # TODO(synk): on v7x with N == 1 only one TensorCore is used (N is the
    # sole "parallel" axis); splitting the HW reduction across a 2-wide core
    # axis with a cross-core combine would recover the idle core.
    out = pl.pallas_call(
        kernel,
        out_shape=jax.ShapeDtypeStruct((N, 1, C), jnp.float32),
        grid_spec=pltpu.PrefetchScalarGridSpec(
            num_scalar_prefetch=0,
            grid=(N, num_hw),
            in_specs=[
                x_spec,
                pl.BlockSpec((C, Cr), lambda n, k: (0, 0)),
                pl.BlockSpec((Cr, C), lambda n, k: (0, 0)),
            ],
            out_specs=pl.BlockSpec((1, 1, C), lambda n, k: (n, 0, 0)),
            scratch_shapes=[
                pltpu.VMEM((1, C, part), jnp.float32),  # running sum partial
                pltpu.VMEM((1, C, part), jnp.float32),  # running max partial
            ],
        ),
        compiler_params=pltpu.CompilerParams(
            dimension_semantics=("parallel", "arbitrary"),
            vmem_limit_bytes=vmem_limit,
        ),
        cost_estimate=cost,
    )(x_flat, w1t, w2t)

    return out.reshape(N, C, 1, 1)


if __name__ == "__main__":
    def reference(x, w1, w2):
        avg = jnp.mean(x, axis=(2, 3))
        mx = jnp.max(x, axis=(2, 3))

        def mlp(v):
            return jnp.maximum(v @ w1.T, 0.0) @ w2.T

        return jax.nn.sigmoid(mlp(avg) + mlp(mx)).reshape(
            x.shape[0], x.shape[1], 1, 1)

    key = jax.random.PRNGKey(0)
    ratio = 2

    # Test 1: module-scale shapes (single-tile fast path).
    N, C, H, W = 2, 4, 16, 16
    Cr = C // ratio
    kx, k1, k2 = jax.random.split(key, 3)
    x = jax.random.normal(kx, (N, C, H, W), dtype=jnp.float32)
    w1 = jax.random.normal(k1, (Cr, C), dtype=jnp.float32) * 0.1
    w2 = jax.random.normal(k2, (C, Cr), dtype=jnp.float32) * 0.1
    out = channel_attention(x, w1, w2)
    jax.block_until_ready(out)
    assert jnp.allclose(out, reference(x, w1, w2), atol=1e-5, rtol=1e-5), \
        "mismatch vs reference (single-tile path)"

    # Test 2: force multi-tile streaming + ragged last tile (masked path) by
    # shrinking the byte budget to one 128-lane slice.
    N2, C2, H2, W2 = 2, 8, 17, 17   # HW = 289 -> tiles of 128 + ragged tail
    Cr2 = C2 // ratio
    kx2, k12, k22 = jax.random.split(jax.random.PRNGKey(0), 3)
    x2 = jax.random.normal(kx2, (N2, C2, H2, W2), dtype=jnp.float32)
    w12 = jax.random.normal(k12, (Cr2, C2), dtype=jnp.float32) * 0.1
    w22 = jax.random.normal(k22, (C2, Cr2), dtype=jnp.float32) * 0.1
    out2 = channel_attention(x2, w12, w22, max_tile_bytes=C2 * _LANE * 4)
    jax.block_until_ready(out2)
    assert jnp.allclose(out2, reference(x2, w12, w22), atol=1e-5, rtol=1e-5), \
        "mismatch vs reference (masked multi-tile path)"

    print("KERNEL_OK")
</pallas_src>

<mosaic_0001>
module attributes {stable_mosaic.version = 11 : i64} {
  func.func @kernel(%arg0: i32, %arg1: i32, %arg2: memref<1x4x256xf32, #tpu.memory_space<vmem>>, %arg3: memref<4x2xf32, #tpu.memory_space<vmem>>, %arg4: memref<2x4xf32, #tpu.memory_space<vmem>>, %arg5: memref<1x1x4xf32, #tpu.memory_space<vmem>>, %arg6: memref<1x4x128xf32, #tpu.memory_space<vmem>>, %arg7: memref<1x4x128xf32, #tpu.memory_space<vmem>>) attributes {dimension_semantics = [#tpu.dimension_semantics<parallel>, #tpu.dimension_semantics<arbitrary>], iteration_bounds = array<i64: 2, 1>, scalar_prefetch = 0 : i64, scratch_operands = 2 : i64, tpu.core_type = #tpu.core_type<tc>, window_params = [{transform_indices = @transform_0, window_bounds = array<i64: 1, 4, 256>}, {pipeline_mode = #tpu.pipeline_mode<synchronous>, transform_indices = @transform_1, window_bounds = array<i64: 4, 2>}, {pipeline_mode = #tpu.pipeline_mode<synchronous>, transform_indices = @transform_2, window_bounds = array<i64: 2, 4>}, {transform_indices = @transform_3, window_bounds = array<i64: 1, 1, 4>}]} {
    %c0_i32 = arith.constant 0 : i32
    %0 = arith.cmpi eq, %arg1, %c0_i32 : i32
    %1 = arith.extui %0 : i1 to i32
    %c0_i32_0 = arith.constant 0 : i32
    %2 = arith.cmpi ne, %1, %c0_i32_0 : i32
    scf.if %2 {
      %cst = arith.constant 0.000000e+00 : f32
      %16 = vector.broadcast %cst : f32 to vector<1x4x128xf32>
      %c0_19 = arith.constant 0 : index
      %c0_20 = arith.constant 0 : index
      %c0_21 = arith.constant 0 : index
      %17 = vector.load %arg6[%c0_19, %c0_20, %c0_21] : memref<1x4x128xf32, #tpu.memory_space<vmem>>, vector<1x4x128xf32>
      tpu.vector_store %arg6[%c0_19, %c0_20, %c0_21], %16 {strides = array<i32>} : memref<1x4x128xf32, #tpu.memory_space<vmem>>, vector<1x4x128xf32>,
      %cst_22 = arith.constant 0xFF800000 : f32
      %18 = vector.broadcast %cst_22 : f32 to vector<1x4x128xf32>
      %c0_23 = arith.constant 0 : index
      %c0_24 = arith.constant 0 : index
      %c0_25 = arith.constant 0 : index
      %19 = vector.load %arg7[%c0_23, %c0_24, %c0_25] : memref<1x4x128xf32, #tpu.memory_space<vmem>>, vector<1x4x128xf32>
      tpu.vector_store %arg7[%c0_23, %c0_24, %c0_25], %18 {strides = array<i32>} : memref<1x4x128xf32, #tpu.memory_space<vmem>>, vector<1x4x128xf32>,
    } else {
    }
    %c0 = arith.constant 0 : index
    %c0_1 = arith.constant 0 : index
    %c0_2 = arith.constant 0 : index
    %3 = vector.load %arg2[%c0, %c0_1, %c0_2] : memref<1x4x256xf32, #tpu.memory_space<vmem>>, vector<1x4x128xf32>
    %c0_3 = arith.constant 0 : index
    %c0_4 = arith.constant 0 : index
    %c128 = arith.constant 128 : index
    %4 = vector.load %arg2[%c0_3, %c0_4, %c128] : memref<1x4x256xf32, #tpu.memory_space<vmem>>, vector<1x4x128xf32>
    %5 = arith.addf %3, %4 : vector<1x4x128xf32>
    %6 = arith.maximumf %3, %4 : vector<1x4x128xf32>
    %c0_5 = arith.constant 0 : index
    %c0_6 = arith.constant 0 : index
    %c0_7 = arith.constant 0 : index
    %7 = vector.load %arg6[%c0_5, %c0_6, %c0_7] : memref<1x4x128xf32, #tpu.memory_space<vmem>>, vector<1x4x128xf32>
    %8 = arith.addf %7, %5 : vector<1x4x128xf32>
    %c0_8 = arith.constant 0 : index
    %c0_9 = arith.constant 0 : index
    %c0_10 = arith.constant 0 : index
    %9 = vector.load %arg6[%c0_8, %c0_9, %c0_10] : memref<1x4x128xf32, #tpu.memory_space<vmem>>, vector<1x4x128xf32>
    tpu.vector_store %arg6[%c0_8, %c0_9, %c0_10], %8 {strides = array<i32>} : memref<1x4x128xf32, #tpu.memory_space<vmem>>, vector<1x4x128xf32>,
    %c0_11 = arith.constant 0 : index
    %c0_12 = arith.constant 0 : index
    %c0_13 = arith.constant 0 : index
    %10 = vector.load %arg7[%c0_11, %c0_12, %c0_13] : memref<1x4x128xf32, #tpu.memory_space<vmem>>, vector<1x4x128xf32>
    %11 = arith.maximumf %10, %6 : vector<1x4x128xf32>
    %c0_14 = arith.constant 0 : index
    %c0_15 = arith.constant 0 : index
    %c0_16 = arith.constant 0 : index
    %12 = vector.load %arg7[%c0_14, %c0_15, %c0_16] : memref<1x4x128xf32, #tpu.memory_space<vmem>>, vector<1x4x128xf32>
    tpu.vector_store %arg7[%c0_14, %c0_15, %c0_16], %11 {strides = array<i32>} : memref<1x4x128xf32, #tpu.memory_space<vmem>>, vector<1x4x128xf32>,
    %c0_i32_17 = arith.constant 0 : i32
    %13 = arith.cmpi eq, %arg1, %c0_i32_17 : i32
    %14 = arith.extui %13 : i1 to i32
    %c0_i32_18 = arith.constant 0 : i32
    %15 = arith.cmpi ne, %14, %c0_i32_18 : i32
    scf.if %15 {
      %c0_19 = arith.constant 0 : index
      %c0_20 = arith.constant 0 : index
      %c0_21 = arith.constant 0 : index
      %16 = vector.load %arg6[%c0_19, %c0_20, %c0_21] : memref<1x4x128xf32, #tpu.memory_space<vmem>>, vector<1x4x128xf32>
      %cst = arith.constant dense<0.000000e+00> : vector<1x4xf32>
      %17 = vector.multi_reduction <add>, %16, %cst [2] : vector<1x4x128xf32> to vector<1x4xf32>
      %cst_22 = arith.constant 3.906250e-03 : f32
      %18 = vector.broadcast %cst_22 : f32 to vector<1x4xf32>
      %19 = arith.mulf %17, %18 : vector<1x4xf32>
      %c0_23 = arith.constant 0 : index
      %c0_24 = arith.constant 0 : index
      %c0_25 = arith.constant 0 : index
      %20 = vector.load %arg7[%c0_23, %c0_24, %c0_25] : memref<1x4x128xf32, #tpu.memory_space<vmem>>, vector<1x4x128xf32>
      %cst_26 = arith.constant dense<0xFF800000> : vector<1x4xf32>
      %21 = vector.multi_reduction <maximumf>, %20, %cst_26 [2] : vector<1x4x128xf32> to vector<1x4xf32>
      %22 = tpu.concatenate %19, %21 in 0 : vector<1x4xf32>, vector<1x4xf32> -> vector<2x4xf32>
      %c0_27 = arith.constant 0 : index
      %c0_28 = arith.constant 0 : index
      %23 = vector.load %arg3[%c0_27, %c0_28] : memref<4x2xf32, #tpu.memory_space<vmem>>, vector<4x2xf32>
      %cst_29 = arith.constant dense<0.000000e+00> : vector<2x2xf32>
      %24 = tpu.matmul %22, %23, %cst_29 {dimension_numbers = #tpu.dot_dimension_numbers<[1], [0], [0], [1], [0, 0, 1, 1], [], []>} : vector<2x4xf32>, vector<4x2xf32>, vector<2x2xf32> -> vector<2x2xf32>
      %cst_30 = arith.constant 0.000000e+00 : f32
      %25 = vector.broadcast %cst_30 : f32 to vector<2x2xf32>
      %26 = arith.maximumf %24, %25 : vector<2x2xf32>
      %c0_31 = arith.constant 0 : index
      %c0_32 = arith.constant 0 : index
      %27 = vector.load %arg4[%c0_31, %c0_32] : memref<2x4xf32, #tpu.memory_space<vmem>>, vector<2x4xf32>
      %cst_33 = arith.constant dense<0.000000e+00> : vector<2x4xf32>
      %28 = tpu.matmul %26, %27, %cst_33 {dimension_numbers = #tpu.dot_dimension_numbers<[1], [0], [0], [1], [0, 0, 1, 1], [], []>} : vector<2x2xf32>, vector<2x4xf32>, vector<2x4xf32> -> vector<2x4xf32>
      %29 = vector.extract_strided_slice %28 {offsets = [0, 0], sizes = [1, 4], strides = [1, 1]} : vector<2x4xf32> to vector<1x4xf32>
      %30 = vector.extract_strided_slice %28 {offsets = [1, 0], sizes = [1, 4], strides = [1, 1]} : vector<2x4xf32> to vector<1x4xf32>
      %31 = arith.addf %29, %30 : vector<1x4xf32>
      %32 = arith.negf %31 : vector<1x4xf32>
      %33 = math.exp %32 : vector<1x4xf32>
      %cst_34 = arith.constant 1.000000e+00 : f32
      %34 = vector.broadcast %cst_34 : f32 to vector<1x4xf32>
      %35 = arith.addf %34, %33 : vector<1x4xf32>
      %36 = arith.divf %34, %35 : vector<1x4xf32>
      %37 = vector.shape_cast %36 : vector<1x4xf32> to vector<1x1x4xf32>
      %c0_35 = arith.constant 0 : index
      %c0_36 = arith.constant 0 : index
      %c0_37 = arith.constant 0 : index
      %38 = vector.load %arg5[%c0_35, %c0_36, %c0_37] : memref<1x1x4xf32, #tpu.memory_space<vmem>>, vector<1x1x4xf32>
      tpu.vector_store %arg5[%c0_35, %c0_36, %c0_37], %37 {strides = array<i32>} : memref<1x1x4xf32, #tpu.memory_space<vmem>>, vector<1x1x4xf32>,
    } else {
    }
    return
  }
  func.func @transform_0(%arg0: i32, %arg1: i32) -> (i32, i32, i32) {
    %c0_i32 = arith.constant 0 : i32
    %c0_i32_0 = arith.constant 0 : i32
    return %arg0, %c0_i32, %arg1 : i32, i32, i32
  }
  func.func @transform_1(%arg0: i32, %arg1: i32) -> (i32, i32) {
    %c0_i32 = arith.constant 0 : i32
    %c0_i32_0 = arith.constant 0 : i32
    %c0_i32_1 = arith.constant 0 : i32
    return %c0_i32, %c0_i32_0 : i32, i32
  }
  func.func @transform_2(%arg0: i32, %arg1: i32) -> (i32, i32) {
    %c0_i32 = arith.constant 0 : i32
    %c0_i32_0 = arith.constant 0 : i32
    %c0_i32_1 = arith.constant 0 : i32
    return %c0_i32, %c0_i32_0 : i32, i32
  }
  func.func @transform_3(%arg0: i32, %arg1: i32) -> (i32, i32, i32) {
    %c0_i32 = arith.constant 0 : i32
    %c0_i32_0 = arith.constant 0 : i32
    %c0_i32_1 = arith.constant 0 : i32
    return %arg0, %c0_i32, %c0_i32_0 : i32, i32, i32
  }
}

</mosaic_0001>

<llo_original>
// kernel: tpu_custom_call.1
$region0: #{tpu_custom_call.1}
  #allocation0 [shape = 'u32[]', space=smem, size = 0x4, offset = 0x4, fixed_abs, tag = 'smem constant byte address 0x4 - core index']
  #allocation1 [shape = 'u32[144,128]{1,0:T(1,128)}', space=vmem, size = 0x12000, scoped, tag = 'internal scratch']
  #allocation2 [shape = 'f32[1,4,128]{2,1,0:T(4,128)}', space=vmem, size = 0x800, scoped, tag = 'scratch operand']
  #allocation3 [shape = 'f32[1,4,128]{2,1,0:T(4,128)}', space=vmem, size = 0x800, scoped, tag = 'scratch operand']
  %s0 = inlined_call_operand.hbm [shape: f32[2,4,256], index: 0, kind: input, shape index: {}]
  %s1 = inlined_call_operand.vmem [shape: f32[4,2], index: 1, kind: input, shape index: {}]
  %s2 = inlined_call_operand.vmem [shape: f32[2,4], index: 2, kind: input, shape index: {}]
  %s3 = inlined_call_operand.hbm [shape: f32[2,1,4], index: 3, kind: output, shape index: {}]
  %s4 = sld [smem:[#allocation0]]
  $region57: #{tpu_custom_call.1} parent=0
    _
  %s6 = ssub.s32 1, %s4
  %s7 = scalar_select 0, %s6, %s4
  $region1: #{tpu_custom_call.1} parent=0
    #allocation4 [shape = 'u8[8192]{0}', space=vmem, size = 0x2000, scoped, tag = 'input window, operand 0']
    #allocation5 [shape = 's32[2]{0}', space=sflag, size = 0x8, scoped, tag = 'scoped memory for tpu_custom_call.1']
    #allocation6 [shape = 's32[2]{0}', space=sflag, size = 0x8, scoped, tag = 'scoped memory for tpu_custom_call.1']
    #allocation7 [shape = 'u8[1024]{0}', space=vmem, size = 0x400, scoped, tag = 'output window, operand 0']
    %8 = vsyncpa [#allocation5], 0
    %s9 = scalar_lea.sflag [#allocation5], 1
    %10 = vsyncpa %s9, 0
    %11 = vsyncpa [#allocation6], 0
    %s12 = scalar_lea.sflag [#allocation6], 1
    %13 = vsyncpa %s12, 0
    loop: start=0, step=1, limit=4
    $region2: #{tpu_custom_call.1} parent=1 // loop_pre_header
      _
    $region3: #{tpu_custom_call.1} parent=1 // loop_header
      %s15 = sphi 0, %s19
      %p16 = scmp.ge.s32.totalorder %s15, 4
      %s22 = sphi 0, %s34
      %s23 = sphi 0, %s30
      %s24 = sphi 0, %s22
      %s25 = sphi 0, %s23
      %s26 = sphi 0, %s24
      %s27 = sphi 0, %s25
      %s39 = sphi 0, %s41
      %s42 = sphi 0, %s39
      %s43 = sphi 0, %s42
      %s59 = sphi 0, %s43
      %s63 = sphi 0, %s63
      %s65 = sphi 0, %s63
      %s66 = sphi 0, %s65
      %s80 = sphi 0, %s66
      %s84 = sphi 0, %s84
      %s86 = sphi 0, %s84
      %s87 = sphi 0, %s86
      %s101 = sphi 0, %s87
      %s107 = sphi 0, %s109
      %s110 = sphi 0, %s107
      %s111 = sphi 0, %s110
      %s127 = sphi 0, %s111
    $region4: #{tpu_custom_call.1} parent=1 // loop_header_branch
      %18 = sbr.rel (%p16) target = $region8
    $region5: #{tpu_custom_call.1} parent=1 // loop_body
      %s20 = ssub.s32 %s15, 1
      %s21 = ssub.s32 %s15, 2
      %s28 = sadd.s32 1, %s23
      %p29 = scmp.ge.s32.totalorder %s28, 1
      %s30 = scalar_select %p29, 0, %s28
      %s31 = sadd.s32 1, %s22
      %s32 = scalar_select %p29, %s31, %s22
      %p33 = scmp.ge.s32.totalorder %s32, 2
      %s34 = scalar_select %p33, 0, %s32
      %s35 = ssub.s32 %s22, %s34
      %s36 = ssub.s32 %s23, %s30
      %s37 = sor.u32 %s35, %s36
      %p38 = scmp.eq.s32.totalorder %s37, 0
      %s40 = sadd.s32 %s39, 1
      %s41 = scalar_select %p38, %s39, %s40
      %p44 = pneg %p38
      %p45 = scmp.eq.s32.totalorder %s15, 1
      %p46 = por %p44, %p45
      %p47 = scmp.ne.s32.totalorder %s39, %s42
      %p48 = scmp.eq.s32.totalorder %s15, 0
      %p49 = por %p47, %p48
      %p50 = scmp.ne.s32.totalorder %s39, %s42
      %p51 = scmp.eq.s32.totalorder %s20, 1
      %p52 = por %p50, %p51
      %p53 = scmp.ne.s32.totalorder %s42, %s43
      %p54 = scmp.eq.s32.totalorder %s20, 0
      %p55 = por %p53, %p54
      %p56 = scmp.ne.s32.totalorder %s42, %s43
      %p57 = scmp.eq.s32.totalorder %s21, 1
      %p58 = por %p56, %p57
      %p60 = scmp.ne.s32.totalorder %s43, %s59
      %p61 = scmp.eq.s32.totalorder %s21, 0
      %p62 = por %p60, %p61
      %s64 = sadd.s32 %s63, 1
      %p67 = scmp.eq.s32.totalorder %s15, 1
      %p68 = scmp.ne.s32.totalorder %s63, %s65
      %p69 = scmp.eq.s32.totalorder %s15, 0
      %p70 = por %p68, %p69
      %p71 = scmp.ne.s32.totalorder %s63, %s65
      %p72 = scmp.eq.s32.totalorder %s20, 1
      %p73 = por %p71, %p72
      %p74 = scmp.ne.s32.totalorder %s65, %s66
      %p75 = scmp.eq.s32.totalorder %s20, 0
      %p76 = por %p74, %p75
      %p77 = scmp.ne.s32.totalorder %s65, %s66
      %p78 = scmp.eq.s32.totalorder %s21, 1
      %p79 = por %p77, %p78
      %p81 = scmp.ne.s32.totalorder %s66, %s80
      %p82 = scmp.eq.s32.totalorder %s21, 0
      %p83 = por %p81, %p82
      %s85 = sadd.s32 %s84, 1
      %p88 = scmp.eq.s32.totalorder %s15, 1
      %p89 = scmp.ne.s32.totalorder %s84, %s86
      %p90 = scmp.eq.s32.totalorder %s15, 0
      %p91 = por %p89, %p90
      %p92 = scmp.ne.s32.totalorder %s84, %s86
      %p93 = scmp.eq.s32.totalorder %s20, 1
      %p94 = por %p92, %p93
      %p95 = scmp.ne.s32.totalorder %s86, %s87
      %p96 = scmp.eq.s32.totalorder %s20, 0
      %p97 = por %p95, %p96
      %p98 = scmp.ne.s32.totalorder %s86, %s87
      %p99 = scmp.eq.s32.totalorder %s21, 1
      %p100 = por %p98, %p99
      %p102 = scmp.ne.s32.totalorder %s87, %s101
      %p103 = scmp.eq.s32.totalorder %s21, 0
      %p104 = por %p102, %p103
      %s105 = ssub.s32 %s22, %s34
      %p106 = scmp.eq.s32.totalorder %s105, 0
      %s108 = sadd.s32 %s107, 1
      %s109 = scalar_select %p106, %s107, %s108
      %p112 = pneg %p106
      %p113 = scmp.eq.s32.totalorder %s15, 1
      %p114 = por %p112, %p113
      %p115 = scmp.ne.s32.totalorder %s107, %s110
      %p116 = scmp.eq.s32.totalorder %s15, 0
      %p117 = por %p115, %p116
      %p118 = scmp.ne.s32.totalorder %s107, %s110
      %p119 = scmp.eq.s32.totalorder %s20, 1
      %p120 = por %p118, %p119
      %p121 = scmp.ne.s32.totalorder %s110, %s111
      %p122 = scmp.eq.s32.totalorder %s20, 0
      %p123 = por %p121, %p122
      %p124 = scmp.ne.s32.totalorder %s110, %s111
      %p125 = scmp.eq.s32.totalorder %s21, 1
      %p126 = por %p124, %p125
      %p128 = scmp.ne.s32.totalorder %s111, %s127
      %p129 = scmp.eq.s32.totalorder %s21, 0
      %p130 = por %p128, %p129
      %p131 = scmp.le.s32.totalorder 1, %s15
      %p132 = scmp.lt.s32.totalorder %s15, 3
      %p133 = pnand %p131, %p132
      %p134 = pneg %p133
      // Predicated region
      $region9: #{tpu_custom_call.1} parent=5 // pred_check
        _
      $region10: #{tpu_custom_call.1} parent=5 // pred_check_branch
        %136 = sbr.rel (%p133) target = $region12
      $region11: #{tpu_custom_call.1} parent=5 // pred_region
        %s137 = ssub.s32 %s15, 1
        // Predicated region
        $region13: #{tpu_custom_call.1} parent=11 // pred_check
          %p138 = pneg %p76
        $region14: #{tpu_custom_call.1} parent=11 // pred_check_branch
          %140 = sbr.rel (%p138) target = $region16
        $region15: #{tpu_custom_call.1} parent=11 // pred_region
          _
        $region16: #{tpu_custom_call.1} parent=11 // pred_fallthru
          _
        // Predicated region
        $region17: #{tpu_custom_call.1} parent=11 // pred_check
          %p141 = pneg %p97
        $region18: #{tpu_custom_call.1} parent=11 // pred_check_branch
          %143 = sbr.rel (%p141) target = $region20
        $region19: #{tpu_custom_call.1} parent=11 // pred_region
          _
        $region20: #{tpu_custom_call.1} parent=11 // pred_fallthru
          _
      $region12: #{tpu_custom_call.1} parent=5 // pred_fallthru
        _
      %p144 = scmp.lt.s32.totalorder %s15, 2
      // Predicated region
      $region21: #{tpu_custom_call.1} parent=5 // pred_check
        %p145 = pneg %p144
      $region22: #{tpu_custom_call.1} parent=5 // pred_check_branch
        %147 = sbr.rel (%p145) target = $region24
      $region23: #{tpu_custom_call.1} parent=5 // pred_region
        // Predicated region
        $region25: #{tpu_custom_call.1} parent=23 // pred_check
          %p148 = pneg %p49
        $region26: #{tpu_custom_call.1} parent=23 // pred_check_branch
          %150 = sbr.rel (%p148) target = $region28
        $region27: #{tpu_custom_call.1} parent=23 // pred_region
          %s151 = sand.u32 %s39, 1
          %s152 = scalar_lea.sflag [#allocation5], %s151
          %s153 = sand.u32 %s39, 1
          %s154 = smul.addr %s153, 8
          %s155 = scalar_lea.vmem [#allocation4], %s154
          %s156 = smul.u32 2, %s23
          %s158 = ssub.s32 128, 128
          %159 = vsyncadd %s152, %s158
          %s160 = smul.addr %s22, 2
          %s161 = sadd.s32 %s156, %s160
          %s162 = smul.addr %s161, 64
          %s163 = scalar_lea.hbm %s0, %s162
          %s165 = sshll.u32 %s155, 4
          %s166 = int_to_ptr.vmem [resolvable:$true] %s165
          %168 = dma.hbm_to_vmem [thread:$0]  %s163, 128, %s166, %s152
        $region28: #{tpu_custom_call.1} parent=23 // pred_fallthru
          _
      $region24: #{tpu_custom_call.1} parent=5 // pred_fallthru
        _
      %p169 = scmp.le.s32.totalorder 1, %s15
      %p170 = scmp.lt.s32.totalorder %s15, 3
      %p171 = pnand %p169, %p170
      %p172 = pneg %p171
      // Predicated region
      $region29: #{tpu_custom_call.1} parent=5 // pred_check
        _
      $region30: #{tpu_custom_call.1} parent=5 // pred_check_branch
        %174 = sbr.rel (%p171) target = $region32
      $region31: #{tpu_custom_call.1} parent=5 // pred_region
        %s175 = ssub.s32 %s15, 1
        %s176 = sand.u32 %s42, 1
        %s177 = scalar_lea.sflag [#allocation5], %s176
        %s178 = sand.u32 %s42, 1
        %s179 = smul.addr %s178, 8
        %s180 = scalar_lea.vmem [#allocation4], %s179
        // Predicated region
        $region33: #{tpu_custom_call.1} parent=31 // pred_check
          %p181 = pneg %p55
        $region34: #{tpu_custom_call.1} parent=31 // pred_check_branch
          %183 = sbr.rel (%p181) target = $region36
        $region35: #{tpu_custom_call.1} parent=31 // pred_region
          %184 = dma.done %s177, 128
        $region36: #{tpu_custom_call.1} parent=31 // pred_fallthru
          _
        %s185 = sand.u32 %s42, 1
        %s186 = scalar_lea.sflag [#allocation5], %s185
        %s187 = sand.u32 %s42, 1
        %s188 = smul.addr %s187, 8
        %s189 = scalar_lea.vmem [#allocation4], %s188
        %p190 = pneg %p55
        %p191 = pneg %p52
        %p192 = pneg %p76
        %p193 = pneg %p73
        %p194 = pneg %p97
        %p195 = pneg %p94
        %p196 = pneg %p123
        %p197 = pneg %p120
        %s198 = sand.u32 %s110, 1
        %s199 = scalar_lea.sflag [#allocation6], %s198
        %s200 = sand.u32 %s110, 1
        %s201 = scalar_lea.vmem [#allocation7], %s200
        %s202 = smul.u32 2, %s25
        %p203 = scmp.eq.s32.totalorder %s25, 0
        // Predicated region
        $region37: #{tpu_custom_call.1} parent=31 // pred_check
          %p204 = pneg %p203
        $region38: #{tpu_custom_call.1} parent=31 // pred_check_branch
          %206 = sbr.rel (%p204) target = $region40
        $region39: #{tpu_custom_call.1} parent=31 // pred_region
          %207 = vst [vmem:[#allocation2] sm:$0xf] 0.0
          %208 = vst [vmem:[#allocation3] sm:$0xf] -inf
        $region40: #{tpu_custom_call.1} parent=31 // pred_fallthru
          _
        %v209 = vld [vmem:[%s180] sm:$0xf]
        %v210 = vld [vmem:[%s180 + $0x4] sm:$0xf]
        %v211 = vadd.f32 %v209, %v210
        %v212 = vmax.f32 %v209, %v210
        %v213 = vld [vmem:[#allocation2] sm:$0xf]
        %v214 = vadd.f32 %v213, %v211
        %215 = vst [vmem:[#allocation2] sm:$0xf] %v214
        %v216 = vld [vmem:[#allocation3] sm:$0xf]
        %v217 = vmax.f32 %v216, %v212
        %218 = vst [vmem:[#allocation3] sm:$0xf] %v217
        // Predicated region
        $region41: #{tpu_custom_call.1} parent=31 // pred_check
          %p219 = pneg %p203
        $region42: #{tpu_custom_call.1} parent=31 // pred_check_branch
          %221 = sbr.rel (%p219) target = $region44
        $region43: #{tpu_custom_call.1} parent=31 // pred_region
          %v222 = vld [vmem:[#allocation2] sm:$0xf]
          %vm223 = vcmask 1043456
          %v224 = vsel %vm223, %v222, 0.0
          %225 = vadd.xlane.f32.xlu0 %v224
          %v226 = vpop.xlane.xlu0 %225
          %v227 = vmul.f32 %v226, 0.00390625
          %v228 = vld [vmem:[#allocation3] sm:$0xf]
          %v229 = vsel %vm223, %v228, -inf
          %230 = vmax.xlane.f32.xlu0 %v229
          %v231 = vpop.xlane.xlu0 %230
          %v233 = vlaneseq
          %v234 = vand.u32 %v233, 127
          %v235 = vlaneseq
          %v236 = vshrl.u32 %v235, 7
          %v237 = vsub.s32 %v234, %v236
          %v238 = vrot.slane %v227, %v237
          %v241 = vlaneseq
          %v242 = vshrl.u32 %v241, 7
          %v243 = vsub.s32 %v234, %v242
          %v244 = vrot.slane %v231, %v243
          %vm246 = vcmask 1040384
          %v247 = vsel %vm246, %v238, %v244
          %v248 = vld [vmem:[%s1] sm:$0xf]
          %vm249 = vcmask 31744
          %v251 = vsel %vm249, %v247, 0
          %v254 = vsel %vm223, %v248, 0
          %256 = vmatprep.subr.mxu0 0.0
          %257 = vmatpush1.msra.mxu0 0.0
          %258 = vmatprep.subr.mxu0 0.0
          %259 = vmatpush1.msra.mxu0 0.0
          %260 = vmatprep.subr.mxu0 0.0
          %261 = vmatpush1.msra.mxu0 0.0
          %262 = vmatprep.subr.mxu0 0.0
          %263 = vmatpush1.msra.mxu0 0.0
          %264 = vmatprep.subr.mxu0 0.0
          %265 = vmatpush1.msra.mxu0 0.0
          %266 = vmatprep.subr.mxu0 0.0
          %267 = vmatpush1.msra.mxu0 0.0
          %268 = vmatprep.subr.mxu0 0.0
          %269 = vmatpush1.msra.mxu0 0.0
          %270 = vmatprep.subr.mxu0 0.0
          %271 = vmatpush1.msra.mxu0 0.0
          %272 = vmatprep.subr.mxu0 0.0
          %273 = vmatpush1.msra.mxu0 0.0
          %274 = vmatprep.subr.mxu0 0.0
          %275 = vmatpush1.msra.mxu0 0.0
          %276 = vmatprep.subr.mxu0 0.0
          %277 = vmatpush1.msra.mxu0 0.0
          %278 = vmatprep.subr.mxu0 0.0
          %279 = vmatpush1.msra.mxu0 0.0
          %280 = vmatprep.subr.mxu0 0.0
          %281 = vmatpush1.msra.mxu0 0.0
          %282 = vmatprep.subr.mxu0 0.0
          %283 = vmatpush1.msra.mxu0 0.0
          %284 = vmatprep.subr.mxu0 0.0
          %285 = vmatpush1.msra.mxu0 0.0
          %286 = vmatprep.subr.mxu0 0.0
          %287 = vmatpush1.msra.mxu0 %v254
          %288 = vmatprep.subr.mxu0 0.0
          %289 = vmatpush2.msra.mxu0 0.0
          %290 = vmatprep.subr.mxu0 0.0
          %291 = vmatpush2.msra.mxu0 0.0
          %292 = vmatprep.subr.mxu0 0.0
          %293 = vmatpush2.msra.mxu0 0.0
          %294 = vmatprep.subr.mxu0 0.0
          %295 = vmatpush2.msra.mxu0 0.0
          %296 = vmatprep.subr.mxu0 0.0
          %297 = vmatpush2.msra.mxu0 0.0
          %298 = vmatprep.subr.mxu0 0.0
          %299 = vmatpush2.msra.mxu0 0.0
          %300 = vmatprep.subr.mxu0 0.0
          %301 = vmatpush2.msra.mxu0 0.0
          %302 = vmatprep.subr.mxu0 0.0
          %303 = vmatpush2.msra.mxu0 0.0
          %304 = vmatprep.subr.mxu0 0.0
          %305 = vmatpush2.msra.mxu0 0.0
          %306 = vmatprep.subr.mxu0 0.0
          %307 = vmatpush2.msra.mxu0 0.0
          %308 = vmatprep.subr.mxu0 0.0
          %309 = vmatpush2.msra.mxu0 0.0
          %310 = vmatprep.subr.mxu0 0.0
          %311 = vmatpush2.msra.mxu0 0.0
          %312 = vmatprep.subr.mxu0 0.0
          %313 = vmatpush2.msra.mxu0 0.0
          %314 = vmatprep.subr.mxu0 0.0
          %315 = vmatpush2.msra.mxu0 0.0
          %316 = vmatprep.subr.mxu0 0.0
          %317 = vmatpush2.msra.mxu0 0.0
          %318 = vmatprep.subr.mxu0 0.0
          %319 = vmatpush2.msra.mxu0 0.0
          %320 = vmatprep.mubr.f32.mxu0 0.0
          %321 = vmatmul.mubr.f32.gmra.mxu0 %v251
          %v322 = vpop.f32.mrf.mxu0
          %v323 = vadd.f32 0.0, %v322
          %v324 = vpop.f32.mrf.mxu0
          %325 = vdwg.mxu0
          %v326 = vmax.f32 %v323, 0.0
          %v327 = vld [vmem:[%s2] sm:$0x3]
          %vm328 = vcmask 15360
          %v330 = vsel %vm328, %v326, 0
          %vm332 = vcmask 1041408
          %v334 = vsel %vm332, %v327, 0
          %336 = vmatprep.subr.mxu0 0.0
          %337 = vmatpush1.msra.mxu0 0.0
          %338 = vmatprep.subr.mxu0 0.0
          %339 = vmatpush1.msra.mxu0 0.0
          %340 = vmatprep.subr.mxu0 0.0
          %341 = vmatpush1.msra.mxu0 0.0
          %342 = vmatprep.subr.mxu0 0.0
          %343 = vmatpush1.msra.mxu0 0.0
          %344 = vmatprep.subr.mxu0 0.0
          %345 = vmatpush1.msra.mxu0 0.0
          %346 = vmatprep.subr.mxu0 0.0
          %347 = vmatpush1.msra.mxu0 0.0
          %348 = vmatprep.subr.mxu0 0.0
          %349 = vmatpush1.msra.mxu0 0.0
          %350 = vmatprep.subr.mxu0 0.0
          %351 = vmatpush1.msra.mxu0 0.0
          %352 = vmatprep.subr.mxu0 0.0
          %353 = vmatpush1.msra.mxu0 0.0
          %354 = vmatprep.subr.mxu0 0.0
          %355 = vmatpush1.msra.mxu0 0.0
          %356 = vmatprep.subr.mxu0 0.0
          %357 = vmatpush1.msra.mxu0 0.0
          %358 = vmatprep.subr.mxu0 0.0
          %359 = vmatpush1.msra.mxu0 0.0
          %360 = vmatprep.subr.mxu0 0.0
          %361 = vmatpush1.msra.mxu0 0.0
          %362 = vmatprep.subr.mxu0 0.0
          %363 = vmatpush1.msra.mxu0 0.0
          %364 = vmatprep.subr.mxu0 0.0
          %365 = vmatpush1.msra.mxu0 0.0
          %366 = vmatprep.subr.mxu0 0.0
          %367 = vmatpush1.msra.mxu0 %v334
          %368 = vmatprep.subr.mxu0 0.0
          %369 = vmatpush2.msra.mxu0 0.0
          %370 = vmatprep.subr.mxu0 0.0
          %371 = vmatpush2.msra.mxu0 0.0
          %372 = vmatprep.subr.mxu0 0.0
          %373 = vmatpush2.msra.mxu0 0.0
          %374 = vmatprep.subr.mxu0 0.0
          %375 = vmatpush2.msra.mxu0 0.0
          %376 = vmatprep.subr.mxu0 0.0
          %377 = vmatpush2.msra.mxu0 0.0
          %378 = vmatprep.subr.mxu0 0.0
          %379 = vmatpush2.msra.mxu0 0.0
          %380 = vmatprep.subr.mxu0 0.0
          %381 = vmatpush2.msra.mxu0 0.0
          %382 = vmatprep.subr.mxu0 0.0
          %383 = vmatpush2.msra.mxu0 0.0
          %384 = vmatprep.subr.mxu0 0.0
          %385 = vmatpush2.msra.mxu0 0.0
          %386 = vmatprep.subr.mxu0 0.0
          %387 = vmatpush2.msra.mxu0 0.0
          %388 = vmatprep.subr.mxu0 0.0
          %389 = vmatpush2.msra.mxu0 0.0
          %390 = vmatprep.subr.mxu0 0.0
          %391 = vmatpush2.msra.mxu0 0.0
          %392 = vmatprep.subr.mxu0 0.0
          %393 = vmatpush2.msra.mxu0 0.0
          %394 = vmatprep.subr.mxu0 0.0
          %395 = vmatpush2.msra.mxu0 0.0
          %396 = vmatprep.subr.mxu0 0.0
          %397 = vmatpush2.msra.mxu0 0.0
          %398 = vmatprep.subr.mxu0 0.0
          %399 = vmatpush2.msra.mxu0 0.0
          %400 = vmatprep.mubr.f32.mxu0 0.0
          %401 = vmatmul.mubr.f32.gmra.mxu0 %v330
          %v402 = vpop.f32.mrf.mxu0
          %v403 = vadd.f32 0.0, %v402
          %v404 = vpop.f32.mrf.mxu0
          %405 = vdwg.mxu0
          %v407 = vrot.slane %v403, 1
          %v409 = vadd.f32 %v403, %v407
          %v410 = vxor.u32 %v409, 2147483648
          %v411 = vmul.f32 %v410, 1.442695
          %v412 = vpow.pop %v411
          %v413 = vadd.f32 %v412, 1.0
          %v414 = vrcp.pop %v413
          %v415 = vmul.f32 1.0, %v414
          %vm416 = vcmask 24576
          %417 = vst.msk [vmem:[%s201] sm:$0x1] %vm416, %v415
        $region44: #{tpu_custom_call.1} parent=31 // pred_fallthru
          _
        %s418 = sand.u32 %s110, 1
        %s419 = scalar_lea.sflag [#allocation6], %s418
        %s420 = sand.u32 %s110, 1
        %s421 = scalar_lea.vmem [#allocation7], %s420
        // Predicated region
        $region45: #{tpu_custom_call.1} parent=31 // pred_check
          %p422 = pneg %p120
        $region46: #{tpu_custom_call.1} parent=31 // pred_check_branch
          %424 = sbr.rel (%p422) target = $region48
        $region47: #{tpu_custom_call.1} parent=31 // pred_region
          %s426 = ssub.s32 16, 16
          %427 = vsyncadd %s419, %s426
          %s428 = smul.addr %s24, 16
          %s429 = scalar_lea.hbm %s3, %s428
          %s431 = sshll.u32 %s421, 4
          %s432 = int_to_ptr.vmem [resolvable:$true] %s431
          %434 = dma.vmem_to_hbm [thread:$0]  %s432, 16, %s429, %s419
        $region48: #{tpu_custom_call.1} parent=31 // pred_fallthru
          _
      $region32: #{tpu_custom_call.1} parent=5 // pred_fallthru
        _
      %p435 = scmp.le.s32.totalorder 2, %s15
      // Predicated region
      $region49: #{tpu_custom_call.1} parent=5 // pred_check
        %p436 = pneg %p435
      $region50: #{tpu_custom_call.1} parent=5 // pred_check_branch
        %438 = sbr.rel (%p436) target = $region52
      $region51: #{tpu_custom_call.1} parent=5 // pred_region
        %s439 = ssub.s32 %s15, 2
        // Predicated region
        $region53: #{tpu_custom_call.1} parent=51 // pred_check
          %p440 = pneg %p126
        $region54: #{tpu_custom_call.1} parent=51 // pred_check_branch
          %442 = sbr.rel (%p440) target = $region56
        $region55: #{tpu_custom_call.1} parent=51 // pred_region
          %s443 = sand.u32 %s111, 1
          %s444 = scalar_lea.sflag [#allocation6], %s443
          %s445 = sand.u32 %s111, 1
          %s446 = scalar_lea.vmem [#allocation7], %s445
          %447 = dma.done %s444, 16
        $region56: #{tpu_custom_call.1} parent=51 // pred_fallthru
          _
      $region52: #{tpu_custom_call.1} parent=5 // pred_fallthru
        _
    $region6: #{tpu_custom_call.1} parent=1 // loop_footer
      %s19 = sadd.s32 1, %s15
    $region7: #{tpu_custom_call.1} parent=1 // loop_footer_branch
      %14 = sbr.rel target = $region3
    $region8: #{tpu_custom_call.1} parent=1 // loop_exit
      _
    %448 = vsyncpa [#allocation5], 1
    %s449 = scalar_lea.sflag [#allocation5], 1
    %450 = vsyncpa %s449, 1
    %451 = vsyncpa [#allocation6], 1
    %s452 = scalar_lea.sflag [#allocation6], 1
    %453 = vsyncpa %s452, 1

</llo_original>
